<compile_context>
chip_gen: v6e
topology: v6e:2x2x1
jax: 0.10.0
libtpu: 0.0.40
codegen_flags: <defaults>
</compile_context>

<pallas_src>
import jax
import jax.numpy as jnp
import numpy as np
from jax import lax
from jax.experimental import pallas as pl
from jax.experimental.pallas import tpu as pltpu

# ---------------- problem sizes (small, synthetic) ----------------
B = 2          # batch
S = 8          # context sequence length
D = 32         # desc_feature_dim
DK = 16        # d_k == d_q, n_heads == 1
LANE = 128     # TPU lane width


def attention_kernel(k_ref, q_ref, m_ref, len_ref, out_ref):
    """Gridless single-shot kernel over the whole (small) batch.

    k_ref   : VMEM (B, S, Dp) f32   zero-padded input_k
    q_ref   : VMEM (B, Dp)    f32   zero-padded input_q
    m_ref   : VMEM (Dp, Dp)   f32   zero-padded fused projection W_Q^T @ W_K
    len_ref : SMEM (B,)       i32   context lengths (scalar reads only)
    out_ref : VMEM (B, Dp)    f32   lane-dense padded output
    """
    b, s, _ = k_ref.shape
    k = k_ref[...]                       # (B, S, Dp)
    q = q_ref[...]                       # (B, Dp)

    # Fused projection: scores[b, s] = q[b] @ M @ k[b, s]^T
    qm = jnp.dot(q, m_ref[...], preferred_element_type=jnp.float32)   # (B, Dp) MXU
    # Degenerate batched contraction over Dp -> VPU multiply + lane reduce
    scores = jnp.sum(qm[:, None, :] * k, axis=-1)                     # (B, S)

    # Per-row valid-length column rebuilt from SMEM scalars (B is static & tiny).
    row = lax.broadcasted_iota(jnp.int32, (b, 1), 0)                  # (B, 1)
    lengths = jnp.zeros((b, 1), jnp.int32)
    for i in range(b):
        lengths = jnp.where(row == i, len_ref[i], lengths)

    # Masked softmax over the first `length` positions of every row (batched, f32).
    pos = lax.broadcasted_iota(jnp.int32, scores.shape, 1)            # (B, S)
    valid = pos < lengths                                             # (B,1) broadcast
    masked = jnp.where(valid, scores, jnp.float32(-1e30))
    m_max = jnp.max(masked, axis=-1, keepdims=True)                   # (B, 1)
    e = jnp.where(valid, jnp.exp(masked - m_max), jnp.float32(0.0))   # (B, S)
    denom = jnp.sum(e, axis=-1, keepdims=True)                        # (B, 1)
    denom_safe = jnp.where(denom > 0.0, denom, jnp.float32(1.0))      # length==0 -> zeros
    e_norm = e / denom_safe                                           # exact division

    # Weighted sum of the raw input_k rows: out[b,:] = sum_s e_norm[b,s] * k[b,s,:]
    out = jnp.sum(e_norm[:, :, None] * k, axis=1)                     # (B, Dp)
    out_ref[...] = out.astype(out_ref.dtype)                          # unmasked lane-dense store


def fuse_weights(w_k, w_q):
    """Hoisted once per weight set:  Q·K^T = q @ (W_Q^T @ W_K) @ k^T."""
    return (w_q.T @ w_k).astype(jnp.float32)                          # (D, D)


def attention_module(input_k, input_q, context_len, m_fused):
    """input_k (B,S,D) f32, input_q (B,D) f32, context_len (B,) int,
    m_fused (D,D) f32 = W_Q^T @ W_K (precomputed via fuse_weights)."""
    b, s, d = input_k.shape
    dp = ((d + LANE - 1) // LANE) * LANE        # lane-dense padded feature dim

    # Zero-pad the feature dim so every load/store is a full 128-lane access;
    # padded columns are zero so they contribute nothing to any contraction.
    k_pad = jnp.pad(input_k.astype(jnp.float32), ((0, 0), (0, 0), (0, dp - d)))
    q_pad = jnp.pad(input_q.astype(jnp.float32), ((0, 0), (0, dp - d)))
    m_pad = jnp.pad(m_fused, ((0, dp - d), (0, dp - d)))
    lens = context_len.astype(jnp.int32)        # (B,) -> SMEM

    out_pad = pl.pallas_call(
        attention_kernel,
        out_shape=jax.ShapeDtypeStruct((b, dp), jnp.float32),
        in_specs=[
            pl.BlockSpec(memory_space=pltpu.MemorySpace.VMEM),   # input_k (padded)
            pl.BlockSpec(memory_space=pltpu.MemorySpace.VMEM),   # input_q (padded)
            pl.BlockSpec(memory_space=pltpu.MemorySpace.VMEM),   # fused W_Q^T @ W_K
            pl.BlockSpec(memory_space=pltpu.MemorySpace.SMEM),   # context lengths
        ],
        out_specs=pl.BlockSpec(memory_space=pltpu.MemorySpace.VMEM),
    )(k_pad, q_pad, m_pad, lens)

    return out_pad[:, :d]                       # slice padding back off outside the kernel


def reference(input_k, input_q, context_len, w_k, w_q):
    """Pure-JAX re-implementation of the PyTorch forward (ground truth)."""
    K = jnp.einsum("bsd,kd->bsk", input_k, w_k)     # (B, S, DK)
    Q = jnp.einsum("bd,kd->bk", input_q, w_q)       # (B, DK)
    scores = jnp.einsum("bk,bsk->bs", Q, K)         # (B, S)
    outs = []
    for b in range(input_k.shape[0]):
        L = int(context_len[b])
        if L == 0:
            outs.append(jnp.zeros((input_k.shape[-1],), jnp.float32))
        else:
            a = jax.nn.softmax(scores[b, :L])
            outs.append(jnp.sum(a[:, None] * input_k[b, :L], axis=0))
    return jnp.stack(outs)


if __name__ == "__main__":
    key = jax.random.PRNGKey(0)
    k1, k2, k3, k4 = jax.random.split(key, 4)

    input_k = jax.random.normal(k1, (B, S, D), dtype=jnp.float32)
    input_q = jax.random.normal(k2, (B, D), dtype=jnp.float32)
    # one example with a real length, one with length 0 (zero-output branch)
    context_len = jnp.array([5, 0], dtype=jnp.int32)

    # Deterministic "Linear" weights, torch layout (out_features, in_features)
    w_k = jax.random.normal(k3, (DK, D), dtype=jnp.float32) * 0.1
    w_q = jax.random.normal(k4, (DK, D), dtype=jnp.float32) * 0.1

    # Fuse the projection weights once (hoisted out of the per-forward path).
    m_fused = fuse_weights(w_k, w_q)

    out = attention_module(input_k, input_q, context_len, m_fused)
    out = jax.block_until_ready(out)

    ref = reference(input_k, input_q, context_len, w_k, w_q)
    assert out.shape == (B, D)
    # All kernel math is exact f32 now (no approximate reciprocal); the only
    # rounding difference vs. the factored reference path is the one-time
    # W_Q^T @ W_K fusion (~1e-6 relative).
    np.testing.assert_allclose(np.asarray(out), np.asarray(ref),
                               rtol=1e-4, atol=1e-4)
    print("KERNEL_OK")
</pallas_src>

<mosaic_0001>
module attributes {stable_mosaic.version = 11 : i64} {
  func.func @attention_kernel(%arg0: memref<2x8x128xf32, #tpu.memory_space<vmem>>, %arg1: memref<2x128xf32, #tpu.memory_space<vmem>>, %arg2: memref<128x128xf32, #tpu.memory_space<vmem>>, %arg3: memref<2xi32, #tpu.memory_space<smem>>, %arg4: memref<2x128xf32, #tpu.memory_space<vmem>>) attributes {dimension_semantics = [], scalar_prefetch = 0 : i64, scratch_operands = 0 : i64, tpu.core_type = #tpu.core_type<tc>} {
    %c0 = arith.constant 0 : index
    %c0_0 = arith.constant 0 : index
    %c0_1 = arith.constant 0 : index
    %0 = vector.load %arg0[%c0, %c0_0, %c0_1] : memref<2x8x128xf32, #tpu.memory_space<vmem>>, vector<2x8x128xf32>
    %c0_2 = arith.constant 0 : index
    %c0_3 = arith.constant 0 : index
    %1 = vector.load %arg1[%c0_2, %c0_3] : memref<2x128xf32, #tpu.memory_space<vmem>>, vector<2x128xf32>
    %c0_4 = arith.constant 0 : index
    %c0_5 = arith.constant 0 : index
    %2 = vector.load %arg2[%c0_4, %c0_5] : memref<128x128xf32, #tpu.memory_space<vmem>>, vector<128x128xf32>
    %cst = arith.constant dense<0.000000e+00> : vector<2x128xf32>
    %3 = tpu.matmul %1, %2, %cst {dimension_numbers = #tpu.dot_dimension_numbers<[1], [0], [0], [1], [0, 0, 1, 1], [], []>} : vector<2x128xf32>, vector<128x128xf32>, vector<2x128xf32> -> vector<2x128xf32>
    %4 = vector.shape_cast %3 : vector<2x128xf32> to vector<2x1x128xf32>
    %5 = vector.broadcast %4 : vector<2x1x128xf32> to vector<2x8x128xf32>
    %6 = arith.mulf %5, %0 : vector<2x8x128xf32>
    %cst_6 = arith.constant dense<0.000000e+00> : vector<2x8xf32>
    %7 = vector.multi_reduction <add>, %6, %cst_6 [2] : vector<2x8x128xf32> to vector<2x8xf32>
    %8 = tpu.iota {dimensions = array<i32: 0>} : vector<2x1xi32>
    %c0_i32 = arith.constant 0 : i32
    %9 = vector.broadcast %c0_i32 : i32 to vector<2x1xi32>
    %c0_i32_7 = arith.constant 0 : i32
    %10 = vector.broadcast %c0_i32_7 : i32 to vector<2x1xi32>
    %11 = arith.cmpi eq, %8, %10 : vector<2x1xi32>
    %c0_8 = arith.constant 0 : index
    %12 = memref.load %arg3[%c0_8] : memref<2xi32, #tpu.memory_space<smem>>
    %13 = vector.broadcast %12 : i32 to vector<2x1xi32>
    %14 = arith.select %11, %13, %9 : vector<2x1xi1>, vector<2x1xi32>
    %c1_i32 = arith.constant 1 : i32
    %15 = vector.broadcast %c1_i32 : i32 to vector<2x1xi32>
    %16 = arith.cmpi eq, %8, %15 : vector<2x1xi32>
    %c1 = arith.constant 1 : index
    %17 = memref.load %arg3[%c1] : memref<2xi32, #tpu.memory_space<smem>>
    %18 = vector.broadcast %17 : i32 to vector<2x1xi32>
    %19 = arith.select %16, %18, %14 : vector<2x1xi1>, vector<2x1xi32>
    %20 = tpu.iota {dimensions = array<i32: 1>} : vector<2x8xi32>
    %21 = vector.broadcast %19 : vector<2x1xi32> to vector<2x8xi32>
    %22 = arith.cmpi slt, %20, %21 : vector<2x8xi32>
    %cst_9 = arith.constant -1.000000e+30 : f32
    %23 = vector.broadcast %cst_9 : f32 to vector<2x8xf32>
    %24 = arith.select %22, %7, %23 : vector<2x8xi1>, vector<2x8xf32>
    %cst_10 = arith.constant dense<0xFF800000> : vector<2xf32>
    %25 = vector.multi_reduction <maximumf>, %24, %cst_10 [1] : vector<2x8xf32> to vector<2xf32>
    %26 = vector.shape_cast %25 : vector<2xf32> to vector<2x1xf32>
    %27 = vector.broadcast %26 : vector<2x1xf32> to vector<2x8xf32>
    %28 = arith.subf %24, %27 : vector<2x8xf32>
    %29 = math.exp %28 : vector<2x8xf32>
    %cst_11 = arith.constant 0.000000e+00 : f32
    %30 = vector.broadcast %cst_11 : f32 to vector<2x8xf32>
    %31 = arith.select %22, %29, %30 : vector<2x8xi1>, vector<2x8xf32>
    %cst_12 = arith.constant dense<0.000000e+00> : vector<2xf32>
    %32 = vector.multi_reduction <add>, %31, %cst_12 [1] : vector<2x8xf32> to vector<2xf32>
    %33 = vector.shape_cast %32 : vector<2xf32> to vector<2x1xf32>
    %cst_13 = arith.constant 0.000000e+00 : f32
    %34 = vector.broadcast %cst_13 : f32 to vector<2x1xf32>
    %35 = arith.cmpf ogt, %33, %34 : vector<2x1xf32>
    %cst_14 = arith.constant 1.000000e+00 : f32
    %36 = vector.broadcast %cst_14 : f32 to vector<2x1xf32>
    %37 = arith.select %35, %33, %36 : vector<2x1xi1>, vector<2x1xf32>
    %38 = vector.broadcast %37 : vector<2x1xf32> to vector<2x8xf32>
    %39 = arith.divf %31, %38 : vector<2x8xf32>
    %40 = vector.shape_cast %39 : vector<2x8xf32> to vector<2x8x1xf32>
    %41 = vector.broadcast %40 : vector<2x8x1xf32> to vector<2x8x128xf32>
    %42 = arith.mulf %41, %0 : vector<2x8x128xf32>
    %cst_15 = arith.constant dense<0.000000e+00> : vector<2x128xf32>
    %43 = vector.multi_reduction <add>, %42, %cst_15 [1] : vector<2x8x128xf32> to vector<2x128xf32>
    %c0_16 = arith.constant 0 : index
    %c0_17 = arith.constant 0 : index
    %44 = vector.load %arg4[%c0_16, %c0_17] : memref<2x128xf32, #tpu.memory_space<vmem>>, vector<2x128xf32>
    tpu.vector_store %arg4[%c0_16, %c0_17], %43 {strides = array<i32>} : memref<2x128xf32, #tpu.memory_space<vmem>>, vector<2x128xf32>,
    return
  }
}

</mosaic_0001>

<llo_original>
// kernel: tpu_custom_call.1
$region0: #{tpu_custom_call.1}
  #allocation0 [shape = 'u32[]', space=smem, size = 0x4, offset = 0x4, fixed_abs, tag = 'smem constant byte address 0x4 - core index']
  #allocation1 [shape = 'u32[144,128]{1,0:T(1,128)}', space=vmem, size = 0x12000, scoped, tag = 'internal scratch']
  %s0 = inlined_call_operand.hbm [shape: f32[2,8,128], index: 0, kind: input, shape index: {}]
  %s1 = inlined_call_operand.hbm [shape: f32[2,128], index: 1, kind: input, shape index: {}]
  %s2 = inlined_call_operand.hbm [shape: f32[128,128], index: 2, kind: input, shape index: {}]
  %s3 = inlined_call_operand.vmem [shape: s32[2], index: 3, kind: input, shape index: {}]
  %s4 = inlined_call_operand.hbm [shape: f32[2,128], index: 4, kind: output, shape index: {}]
  %s5 = sld [smem:[#allocation0]]
  $region42: #{tpu_custom_call.1} parent=0
    _
  %s7 = ssub.s32 1, %s5
  %s8 = scalar_select 0, %s7, %s5
  $region1: #{tpu_custom_call.1} parent=0
    #allocation2 [shape = 'u8[8192]{0}', space=vmem, size = 0x2000, scoped, tag = 'input window, operand 0, single buffered']
    #allocation3 [shape = 's32[1]{0}', space=sflag, size = 0x4, scoped, tag = 'scoped memory for tpu_custom_call.1']
    #allocation4 [shape = 's32[1]{0}', space=sflag, size = 0x4, scoped, tag = 'scoped memory for tpu_custom_call.1']
    #allocation5 [shape = 's32[1]{0}', space=sflag, size = 0x4, scoped, tag = 'scoped memory for tpu_custom_call.1']
    #allocation6 [shape = 'u8[1024]{0}', space=vmem, size = 0x400, scoped, tag = 'input window, operand 1, single buffered']
    #allocation7 [shape = 's32[1]{0}', space=sflag, size = 0x4, scoped, tag = 'scoped memory for tpu_custom_call.1']
    #allocation8 [shape = 'u8[65536]{0}', space=vmem, size = 0x10000, scoped, tag = 'input window, operand 2, single buffered']
    #allocation9 [shape = 'u8[512]{0}', space=smem, size = 0x200, scoped, tag = 'input window, operand 3, single buffered']
    #allocation10 [shape = 'u8[1024]{0}', space=vmem, size = 0x400, scoped, tag = 'output window, operand 0, single buffered']
    %9 = vsyncpa [#allocation3], 0
    %10 = vsyncpa [#allocation7], 0
    %11 = vsyncpa [#allocation5], 0
    %12 = vsyncpa [#allocation4], 0
    // Predicated region
    $region2: #{tpu_custom_call.1} parent=1 // pred_check
      _
    $region3: #{tpu_custom_call.1} parent=1 // pred_check_branch
      %14 = sbr.rel (0) target = $region5
    $region4: #{tpu_custom_call.1} parent=1 // pred_region
      %s16 = ssub.s32 256, 256
      %17 = vsyncadd [#allocation3], %s16
      %s18 = sshll.u32 [#allocation2], 4
      %s19 = int_to_ptr.vmem [resolvable:$true] %s18
      %24 = dma.hbm_to_vmem [thread:$0]  %s0, 256, %s19, [#allocation3], 128, 128, 8
    $region5: #{tpu_custom_call.1} parent=1 // pred_fallthru
      _
    // Predicated region
    $region6: #{tpu_custom_call.1} parent=1 // pred_check
      _
    $region7: #{tpu_custom_call.1} parent=1 // pred_check_branch
      %26 = sbr.rel (0) target = $region9
    $region8: #{tpu_custom_call.1} parent=1 // pred_region
      %s28 = ssub.s32 32, 32
      %29 = vsyncadd [#allocation7], %s28
      %s31 = sshll.u32 [#allocation6], 4
      %s32 = int_to_ptr.vmem [resolvable:$true] %s31
      %34 = dma.hbm_to_vmem [thread:$0]  %s1, 32, %s32, [#allocation7]
    $region9: #{tpu_custom_call.1} parent=1 // pred_fallthru
      _
    // Predicated region
    $region10: #{tpu_custom_call.1} parent=1 // pred_check
      _
    $region11: #{tpu_custom_call.1} parent=1 // pred_check_branch
      %36 = sbr.rel (0) target = $region13
    $region12: #{tpu_custom_call.1} parent=1 // pred_region
      %s38 = ssub.s32 2048, 2048
      %39 = vsyncadd [#allocation7], %s38
      %s40 = sshll.u32 [#allocation8], 4
      %s41 = int_to_ptr.vmem [resolvable:$true] %s40
      %46 = dma.hbm_to_vmem [thread:$0]  %s2, 2048, %s41, [#allocation7], 128, 128, 8
    $region13: #{tpu_custom_call.1} parent=1 // pred_fallthru
      _
    // Predicated region
    $region14: #{tpu_custom_call.1} parent=1 // pred_check
      _
    $region15: #{tpu_custom_call.1} parent=1 // pred_check_branch
      %48 = sbr.rel (0) target = $region17
    $region16: #{tpu_custom_call.1} parent=1 // pred_region
      %s50 = ssub.s32 16, 16
      %51 = vsyncadd [#allocation5], %s50
      %s53 = sshll.u32 %s3, 4
      %s54 = int_to_ptr.vmem [resolvable:$true] %s53
      %56 = dma.vmem_to_smem %s54, 16, [#allocation9], [#allocation5]
    $region17: #{tpu_custom_call.1} parent=1 // pred_fallthru
      _
    // Predicated region
    $region18: #{tpu_custom_call.1} parent=1 // pred_check
      _
    $region19: #{tpu_custom_call.1} parent=1 // pred_check_branch
      %58 = sbr.rel (0) target = $region21
    $region20: #{tpu_custom_call.1} parent=1 // pred_region
      %59 = dma.done [#allocation3], 256
    $region21: #{tpu_custom_call.1} parent=1 // pred_fallthru
      _
    // Predicated region
    $region22: #{tpu_custom_call.1} parent=1 // pred_check
      _
    $region23: #{tpu_custom_call.1} parent=1 // pred_check_branch
      %61 = sbr.rel (0) target = $region25
    $region24: #{tpu_custom_call.1} parent=1 // pred_region
      %62 = dma.done [#allocation7], 32
    $region25: #{tpu_custom_call.1} parent=1 // pred_fallthru
      _
    // Predicated region
    $region26: #{tpu_custom_call.1} parent=1 // pred_check
      _
    $region27: #{tpu_custom_call.1} parent=1 // pred_check_branch
      %64 = sbr.rel (0) target = $region29
    $region28: #{tpu_custom_call.1} parent=1 // pred_region
      %65 = dma.done [#allocation7], 2048
    $region29: #{tpu_custom_call.1} parent=1 // pred_fallthru
      _
    // Predicated region
    $region30: #{tpu_custom_call.1} parent=1 // pred_check
      _
    $region31: #{tpu_custom_call.1} parent=1 // pred_check_branch
      %67 = sbr.rel (0) target = $region33
    $region32: #{tpu_custom_call.1} parent=1 // pred_region
      %68 = dma.done [#allocation5], 16
    $region33: #{tpu_custom_call.1} parent=1 // pred_fallthru
      _
    %69 = sfence
    %v70 = vld [vmem:[#allocation2] sm:$0xff]
    %v71 = vld [vmem:[#allocation2 + $0x8] sm:$0xff]
    %v72 = vld [vmem:[#allocation6] sm:$0x3]
    %v73 = vld [vmem:[#allocation8] sm:$0xff]
    %v74 = vld [vmem:[#allocation8 + $0x8] sm:$0xff]
    %v75 = vld [vmem:[#allocation8 + $0x10] sm:$0xff]
    %v76 = vld [vmem:[#allocation8 + $0x18] sm:$0xff]
    %v77 = vld [vmem:[#allocation8 + $0x20] sm:$0xff]
    %v78 = vld [vmem:[#allocation8 + $0x28] sm:$0xff]
    %v79 = vld [vmem:[#allocation8 + $0x30] sm:$0xff]
    %v80 = vld [vmem:[#allocation8 + $0x38] sm:$0xff]
    %v81 = vld [vmem:[#allocation8 + $0x40] sm:$0xff]
    %v82 = vld [vmem:[#allocation8 + $0x48] sm:$0xff]
    %v83 = vld [vmem:[#allocation8 + $0x50] sm:$0xff]
    %v84 = vld [vmem:[#allocation8 + $0x58] sm:$0xff]
    %v85 = vld [vmem:[#allocation8 + $0x60] sm:$0xff]
    %v86 = vld [vmem:[#allocation8 + $0x68] sm:$0xff]
    %v87 = vld [vmem:[#allocation8 + $0x70] sm:$0xff]
    %v88 = vld [vmem:[#allocation8 + $0x78] sm:$0xff]
    %89 = vmatprep.subr.mxu0 0.0
    %90 = vmatpush1.msra.mxu0 %v88
    %91 = vmatprep.subr.mxu0 0.0
    %92 = vmatpush1.msra.mxu0 %v87
    %93 = vmatprep.subr.mxu0 0.0
    %94 = vmatpush1.msra.mxu0 %v86
    %95 = vmatprep.subr.mxu0 0.0
    %96 = vmatpush1.msra.mxu0 %v85
    %97 = vmatprep.subr.mxu0 0.0
    %98 = vmatpush1.msra.mxu0 %v84
    %99 = vmatprep.subr.mxu0 0.0
    %100 = vmatpush1.msra.mxu0 %v83
    %101 = vmatprep.subr.mxu0 0.0
    %102 = vmatpush1.msra.mxu0 %v82
    %103 = vmatprep.subr.mxu0 0.0
    %104 = vmatpush1.msra.mxu0 %v81
    %105 = vmatprep.subr.mxu0 0.0
    %106 = vmatpush1.msra.mxu0 %v80
    %107 = vmatprep.subr.mxu0 0.0
    %108 = vmatpush1.msra.mxu0 %v79
    %109 = vmatprep.subr.mxu0 0.0
    %110 = vmatpush1.msra.mxu0 %v78
    %111 = vmatprep.subr.mxu0 0.0
    %112 = vmatpush1.msra.mxu0 %v77
    %113 = vmatprep.subr.mxu0 0.0
    %114 = vmatpush1.msra.mxu0 %v76
    %115 = vmatprep.subr.mxu0 0.0
    %116 = vmatpush1.msra.mxu0 %v75
    %117 = vmatprep.subr.mxu0 0.0
    %118 = vmatpush1.msra.mxu0 %v74
    %119 = vmatprep.subr.mxu0 0.0
    %120 = vmatpush1.msra.mxu0 %v73
    %121 = vmatprep.subr.mxu0 0.0
    %122 = vmatpush2.msra.mxu0 0.0
    %123 = vmatprep.subr.mxu0 0.0
    %124 = vmatpush2.msra.mxu0 0.0
    %125 = vmatprep.subr.mxu0 0.0
    %126 = vmatpush2.msra.mxu0 0.0
    %127 = vmatprep.subr.mxu0 0.0
    %128 = vmatpush2.msra.mxu0 0.0
    %129 = vmatprep.subr.mxu0 0.0
    %130 = vmatpush2.msra.mxu0 0.0
    %131 = vmatprep.subr.mxu0 0.0
    %132 = vmatpush2.msra.mxu0 0.0
    %133 = vmatprep.subr.mxu0 0.0
    %134 = vmatpush2.msra.mxu0 0.0
    %135 = vmatprep.subr.mxu0 0.0
    %136 = vmatpush2.msra.mxu0 0.0
    %137 = vmatprep.subr.mxu0 0.0
    %138 = vmatpush2.msra.mxu0 0.0
    %139 = vmatprep.subr.mxu0 0.0
    %140 = vmatpush2.msra.mxu0 0.0
    %141 = vmatprep.subr.mxu0 0.0
    %142 = vmatpush2.msra.mxu0 0.0
    %143 = vmatprep.subr.mxu0 0.0
    %144 = vmatpush2.msra.mxu0 0.0
    %145 = vmatprep.subr.mxu0 0.0
    %146 = vmatpush2.msra.mxu0 0.0
    %147 = vmatprep.subr.mxu0 0.0
    %148 = vmatpush2.msra.mxu0 0.0
    %149 = vmatprep.subr.mxu0 0.0
    %150 = vmatpush2.msra.mxu0 0.0
    %151 = vmatprep.subr.mxu0 0.0
    %152 = vmatpush2.msra.mxu0 0.0
    %153 = vmatprep.mubr.f32.mxu0 0.0
    %154 = vmatmul.mubr.f32.gmra.mxu0 %v72
    %v155 = vpop.f32.mrf.mxu0
    %v156 = vadd.f32 0.0, %v155
    %v157 = vpop.f32.mrf.mxu0
    %158 = vdwg.mxu0
    %v161 = vunpack.c.l.s4 1966171168
    %v162 = vunpack.c.0.s8 %v161
    %v163 = vlaneseq
    %v164 = vshrl.u32 %v163, 7
    %v165 = vsub.s32 %v162, %v164
    %v166 = vrot.slane %v156, %v165
    %v167 = vcombine.high %v166, %v166
    %v169 = vunpack.c.l.s4 1966171168
    %v170 = vunpack.c.0.s8 %v169
    %v171 = vlaneseq
    %v172 = vshrl.u32 %v171, 7
    %v173 = vsub.s32 %v170, %v172
    %v174 = vrot.slane %v166, %v173
    %v176 = vunpack.c.l.s4 1966171168
    %v177 = vunpack.c.0.s8 %v176
    %v178 = vlaneseq
    %v179 = vshrl.u32 %v178, 7
    %v180 = vsub.s32 %v177, %v179
    %v181 = vrot.slane %v167, %v180
    %v182 = vlaneseq
    %v183 = vshrl.u32 %v182, 7
    %v184 = vsub.s32 0, %v183
    %v185 = vrot.slane %v174, %v184
    %v186 = vlaneseq
    %v187 = vshrl.u32 %v186, 7
    %v188 = vsub.s32 0, %v187
    %v189 = vrot.slane %v181, %v188
    %v192 = vmul.f32 %v185, %v70
    %v193 = vmul.f32 %v189, %v71
    %194 = vadd.xlane.f32.xlu0 %v192
    %v195 = vpop.xlane.xlu0 %194
    %196 = vadd.xlane.f32.xlu0 %v193
    %v197 = vpop.xlane.xlu0 %196
    %v198 = vlaneseq
    %v199 = vshrl.u32 %v198, 7
    %vm200 = vcmp.eq.s32.totalorder %v199, 0
    %s201 = sld [smem:[#allocation9]]
    %v202 = vstv %s201
    %v203 = vsel %vm200, %v202, 0
    %vm204 = vcmp.eq.s32.totalorder %v199, 1
    %s205 = sld [smem:[#allocation9 + $0x1]]
    %v206 = vstv %s205
    %v207 = vsel %vm204, %v206, %v203
    %v208 = vlaneseq
    %v209 = vand.u32 %v208, 127
    %vm210 = vcmp.lt.s32.totalorder %v209, %v207
    %v213 = vlaneseq
    %v214 = vshrl.u32 %v213, 7
    %v215 = vsub.s32 %v209, %v214
    %v216 = vrot.slane %v195, %v215
    %v217 = vlaneseq
    %v218 = vshrl.u32 %v217, 7
    %v219 = vsub.s32 %v209, %v218
    %v220 = vrot.slane %v197, %v219
    %vm221 = vcmask 1041409
    %v222 = vsel %vm221, %v220, %v216
    %v224 = vsel %vm210, %v222, -1e+30
    %vm225 = vcmask 58368
    %v226 = vsel %vm225, %v224, -inf
    %227 = vmax.xlane.f32.xlu0 %v226
    %v228 = vpop.xlane.xlu0 %227
    %v229 = vsub.f32 %v224, %v228
    %v230 = vmul.f32 %v229, 1.442695
    %v231 = vpow.pop %v230
    %v232 = vsel %vm210, %v231, 0.0
    %v233 = vsel %vm225, %v232, 0.0
    %234 = vadd.xlane.f32.xlu0 %v233
    %v235 = vpop.xlane.xlu0 %234
    %vm236 = vcmp.gt.f32.partialorder %v235, 0.0
    %v237 = vsel %vm236, %v235, 1.0
    %v238 = vrcp.pop %v237
    %v239 = vmul.f32 %v232, %v238
    %v240 = vlaneseq
    %v241 = vshrl.u32 %v240, 7
    %v242 = vsub.s32 0, %v241
    %v243 = vrot.slane %v239, %v242
    %245 = vbcast.lane.b32.xlu0 %v243, 256
    %v246 = vpop.permute.xlu0 %245
    %v247 = vlaneseq
    %v248 = vshrl.u32 %v247, 7
    %v249 = vsub.s32 1, %v248
    %v250 = vrot.slane %v239, %v249
    %252 = vbcast.lane.b32.xlu0 %v250, 256
    %v253 = vpop.permute.xlu0 %252
    %v254 = vmul.f32 %v246, %v70
    %v255 = vmul.f32 %v253, %v71
    %v256 = vrot.slane %v254, 4
    %v257 = vadd.f32 %v254, %v256
    %v258 = vrot.slane %v257, 2
    %v259 = vadd.f32 %v257, %v258
    %v260 = vrot.slane %v259, 1
    %v261 = vadd.f32 %v259, %v260
    %v262 = vrot.slane %v255, 4
    %v263 = vadd.f32 %v255, %v262
    %v264 = vrot.slane %v263, 2
    %v265 = vadd.f32 %v263, %v264
    %v266 = vrot.slane %v265, 1
    %v267 = vadd.f32 %v265, %v266
    %v270 = vsel %vm221, %v267, %v261
    %272 = vst [vmem:[#allocation10] sm:$0x3] %v270
    // Predicated region
    $region34: #{tpu_custom_call.1} parent=1 // pred_check
      _
    $region35: #{tpu_custom_call.1} parent=1 // pred_check_branch
      %274 = sbr.rel (0) target = $region37
    $region36: #{tpu_custom_call.1} parent=1 // pred_region
      %s276 = ssub.s32 32, 32
      %277 = vsyncadd [#allocation4], %s276
      %s279 = sshll.u32 [#allocation10], 4
      %s280 = int_to_ptr.vmem [resolvable:$true] %s279
      %282 = dma.vmem_to_hbm [thread:$0]  %s280, 32, %s4, [#allocation4]
    $region37: #{tpu_custom_call.1} parent=1 // pred_fallthru
      _
    // Predicated region
    $region38: #{tpu_custom_call.1} parent=1 // pred_check
      _
    $region39: #{tpu_custom_call.1} parent=1 // pred_check_branch
      %284 = sbr.rel (0) target = $region41
    $region40: #{tpu_custom_call.1} parent=1 // pred_region
      %285 = dma.done [#allocation4], 32
    $region41: #{tpu_custom_call.1} parent=1 // pred_fallthru
      _
    %286 = vsyncpa [#allocation3], 1
    %287 = vsyncpa [#allocation7], 1
    %288 = vsyncpa [#allocation4], 1
    %289 = vsyncpa [#allocation5], 1

</llo_original>
